<compile_context>
chip_gen: v5e
topology: v5e:2x2
jax: 0.10.0
libtpu: 0.0.40
codegen_flags: <defaults>
</compile_context>

<pallas_src>
import jax
import jax.numpy as jnp
from jax.experimental import pallas as pl
from jax.experimental.pallas import tpu as pltpu

_LANES = 128


def _normalize_kernel(x_ref, mean_ref, inv_std_ref, o_ref):
    # Elementwise hot path: (x - mean) * inv_std, row-broadcast of mean/inv_std.
    o_ref[...] = (x_ref[...] - mean_ref[...]) * inv_std_ref[...]


def _run(x2d, mean_row, inv_row, block_rows):
    """x2d: (rows, C); mean_row/inv_row: (1, C) resident rows."""
    rows, C = x2d.shape
    tb = block_rows if rows > block_rows else rows  # full dim OR multiple of 8
    grid = (pl.cdiv(rows, tb),)
    return pl.pallas_call(
        _normalize_kernel,
        out_shape=jax.ShapeDtypeStruct((rows, C), x2d.dtype),
        grid=grid,
        in_specs=[
            pl.BlockSpec((tb, C), lambda i: (i, 0)),
            pl.BlockSpec((1, C), lambda i: (0, 0)),   # stays resident
            pl.BlockSpec((1, C), lambda i: (0, 0)),   # stays resident
        ],
        out_specs=pl.BlockSpec((tb, C), lambda i: (i, 0)),
        compiler_params=pltpu.CompilerParams(
            dimension_semantics=("parallel",)
        ),
    )(x2d, mean_row, inv_row)


def normalize_layer(x, mean, std, *, block_rows=1024):
    """(x - mean) / std, broadcasting mean/std (shape [F]) over the batch."""
    B, F = x.shape
    dt = x.dtype
    mean2 = mean.astype(dt).reshape(1, F)
    inv2 = (1.0 / std.astype(jnp.float32)).astype(dt).reshape(1, F)

    if _LANES % F == 0:
        # Lane-dense path: fold `rep` batch rows into one 128-wide lane row.
        rep = _LANES // F
        pad = (-B) % rep
        x_in = x if pad == 0 else jnp.concatenate(
            [x, jnp.zeros((pad, F), dt)], axis=0)
        rows = (B + pad) // rep
        x_folded = x_in.reshape(rows, _LANES)
        mean_row = jnp.tile(mean2, (1, rep))   # (1, 128)
        inv_row = jnp.tile(inv2, (1, rep))     # (1, 128)
        out = _run(x_folded, mean_row, inv_row, block_rows)
        return out.reshape(B + pad, F)[:B]

    # Fallback: keep (B, F) layout, full feature dim per block, tile batch.
    return _run(x, mean2, inv2, block_rows)


if __name__ == "__main__":
    key = jax.random.PRNGKey(0)
    k0, k1 = jax.random.split(key)

    # Synthetic "training data" X0 used in __init__ to derive mean/std (dim=0).
    N0, F = 64, 32
    X0 = jax.random.normal(k0, (N0, F), dtype=jnp.float32) * 2.0 + 0.5

    mean = jnp.mean(X0, axis=0)
    std = jnp.std(X0, axis=0, ddof=1)  # torch.std is unbiased (ddof=1)

    # Forward input.
    B = 8
    x = jax.random.normal(k1, (B, F), dtype=jnp.float32)

    out = normalize_layer(x, mean, std)
    out = jax.block_until_ready(out)

    # Reference check in plain JAX.
    ref = (x - mean[None, :]) / std[None, :]
    assert jnp.allclose(out, ref, atol=1e-5, rtol=1e-5), "mismatch vs reference"

    print("KERNEL_OK")
</pallas_src>

<mosaic_0001>
module attributes {stable_mosaic.version = 11 : i64} {
  func.func @_normalize_kernel(%arg0: i32, %arg1: memref<2x128xf32, #tpu.memory_space<vmem>>, %arg2: memref<1x128xf32, #tpu.memory_space<vmem>>, %arg3: memref<1x128xf32, #tpu.memory_space<vmem>>, %arg4: memref<2x128xf32, #tpu.memory_space<vmem>>) attributes {dimension_semantics = [#tpu.dimension_semantics<parallel>], iteration_bounds = array<i64: 1>, scalar_prefetch = 0 : i64, scratch_operands = 0 : i64, tpu.core_type = #tpu.core_type<tc>, window_params = [{transform_indices = @transform_0, window_bounds = array<i64: 2, 128>}, {pipeline_mode = #tpu.pipeline_mode<synchronous>, transform_indices = @transform_1, window_bounds = array<i64: 1, 128>}, {pipeline_mode = #tpu.pipeline_mode<synchronous>, transform_indices = @transform_2, window_bounds = array<i64: 1, 128>}, {transform_indices = @transform_3, window_bounds = array<i64: 2, 128>}]} {
    %c0 = arith.constant 0 : index
    %c0_0 = arith.constant 0 : index
    %0 = vector.load %arg1[%c0, %c0_0] : memref<2x128xf32, #tpu.memory_space<vmem>>, vector<2x128xf32>
    %c0_1 = arith.constant 0 : index
    %c0_2 = arith.constant 0 : index
    %1 = vector.load %arg2[%c0_1, %c0_2] : memref<1x128xf32, #tpu.memory_space<vmem>>, vector<1x128xf32>
    %2 = vector.broadcast %1 : vector<1x128xf32> to vector<2x128xf32>
    %3 = arith.subf %0, %2 : vector<2x128xf32>
    %c0_3 = arith.constant 0 : index
    %c0_4 = arith.constant 0 : index
    %4 = vector.load %arg3[%c0_3, %c0_4] : memref<1x128xf32, #tpu.memory_space<vmem>>, vector<1x128xf32>
    %5 = vector.broadcast %4 : vector<1x128xf32> to vector<2x128xf32>
    %6 = arith.mulf %3, %5 : vector<2x128xf32>
    %c0_5 = arith.constant 0 : index
    %c0_6 = arith.constant 0 : index
    %7 = vector.load %arg4[%c0_5, %c0_6] : memref<2x128xf32, #tpu.memory_space<vmem>>, vector<2x128xf32>
    tpu.vector_store %arg4[%c0_5, %c0_6], %6 {strides = array<i32>} : memref<2x128xf32, #tpu.memory_space<vmem>>, vector<2x128xf32>,
    return
  }
  func.func @transform_0(%arg0: i32) -> (i32, i32) {
    %c0_i32 = arith.constant 0 : i32
    %c0_i32_0 = arith.constant 0 : i32
    return %arg0, %c0_i32 : i32, i32
  }
  func.func @transform_1(%arg0: i32) -> (i32, i32) {
    %c0_i32 = arith.constant 0 : i32
    %c0_i32_0 = arith.constant 0 : i32
    %c0_i32_1 = arith.constant 0 : i32
    return %c0_i32, %c0_i32_0 : i32, i32
  }
  func.func @transform_2(%arg0: i32) -> (i32, i32) {
    %c0_i32 = arith.constant 0 : i32
    %c0_i32_0 = arith.constant 0 : i32
    %c0_i32_1 = arith.constant 0 : i32
    return %c0_i32, %c0_i32_0 : i32, i32
  }
  func.func @transform_3(%arg0: i32) -> (i32, i32) {
    %c0_i32 = arith.constant 0 : i32
    %c0_i32_0 = arith.constant 0 : i32
    return %arg0, %c0_i32 : i32, i32
  }
}

</mosaic_0001>

<llo_original>
// kernel: tpu_custom_call.1
$region0: #{tpu_custom_call.1}
  #allocation0 [shape = 'u32[]', space=smem, size = 0x4, offset = 0x4, fixed_abs, tag = 'smem constant byte address 0x4 - core index']
  #allocation1 [shape = 'u32[72,128]{1,0:T(1,128)}', space=vmem, size = 0x9000, scoped, tag = 'internal scratch']
  %s0 = inlined_call_operand.hbm [shape: f32[2,128], index: 0, kind: input, shape index: {}]
  %s1 = inlined_call_operand.hbm [shape: f32[1,128], index: 1, kind: input, shape index: {}]
  %s2 = inlined_call_operand.vmem [shape: f32[1,128], index: 2, kind: input, shape index: {}]
  %s3 = inlined_call_operand.hbm [shape: f32[2,128], index: 3, kind: output, shape index: {}]
  %s4 = sld [smem:[#allocation0]]
  $region30: #{tpu_custom_call.1} parent=0
    _
  %s6 = ssub.s32 1, %s4
  %s7 = scalar_select 0, %s6, %s4
  $region1: #{tpu_custom_call.1} parent=0
    #allocation2 [shape = 'u8[1024]{0}', space=vmem, size = 0x400, scoped, tag = 'input window, operand 0, single buffered']
    #allocation3 [shape = 's32[1]{0}', space=sflag, size = 0x4, scoped, tag = 'scoped memory for tpu_custom_call.1']
    #allocation4 [shape = 's32[1]{0}', space=sflag, size = 0x4, scoped, tag = 'scoped memory for tpu_custom_call.1']
    #allocation5 [shape = 'u8[512]{0}', space=vmem, size = 0x400, scoped, tag = 'input window, operand 1, single buffered']
    #allocation6 [shape = 's32[1]{0}', space=sflag, size = 0x4, scoped, tag = 'scoped memory for tpu_custom_call.1']
    #allocation7 [shape = 'u8[1024]{0}', space=vmem, size = 0x400, scoped, tag = 'output window, operand 0, single buffered']
    %8 = vsyncpa [#allocation3], 0
    %9 = vsyncpa [#allocation6], 0
    %10 = vsyncpa [#allocation4], 0
    // Predicated region
    $region2: #{tpu_custom_call.1} parent=1 // pred_check
      _
    $region3: #{tpu_custom_call.1} parent=1 // pred_check_branch
      %12 = sbr.rel (0) target = $region5
    $region4: #{tpu_custom_call.1} parent=1 // pred_region
      %14 = vsyncadd [#allocation3], 0
      %s16 = sshll.u32 %s0, 4
      %s17 = int_to_ptr.hbm [resolvable:$true] %s16
      %s18 = sshll.u32 [#allocation2], 4
      %s19 = int_to_ptr.vmem [resolvable:$true] %s18
      %21 = dma.hbm_to_vmem [thread:$0]  %s17, 32, %s19, [#allocation3]
    $region5: #{tpu_custom_call.1} parent=1 // pred_fallthru
      _
    // Predicated region
    $region6: #{tpu_custom_call.1} parent=1 // pred_check
      _
    $region7: #{tpu_custom_call.1} parent=1 // pred_check_branch
      %23 = sbr.rel (0) target = $region9
    $region8: #{tpu_custom_call.1} parent=1 // pred_region
      %25 = vsyncadd [#allocation6], 0
      %s27 = sshll.u32 %s1, 4
      %s28 = int_to_ptr.hbm [resolvable:$true] %s27
      %s29 = sshll.u32 [#allocation5], 4
      %s30 = int_to_ptr.vmem [resolvable:$true] %s29
      %32 = dma.hbm_to_vmem [thread:$0]  %s28, 16, %s30, [#allocation6]
    $region9: #{tpu_custom_call.1} parent=1 // pred_fallthru
      _
    // Predicated region
    $region10: #{tpu_custom_call.1} parent=1 // pred_check
      _
    $region11: #{tpu_custom_call.1} parent=1 // pred_check_branch
      %34 = sbr.rel (0) target = $region13
    $region12: #{tpu_custom_call.1} parent=1 // pred_region
      _
    $region13: #{tpu_custom_call.1} parent=1 // pred_fallthru
      _
    // Predicated region
    $region14: #{tpu_custom_call.1} parent=1 // pred_check
      _
    $region15: #{tpu_custom_call.1} parent=1 // pred_check_branch
      %36 = sbr.rel (0) target = $region17
    $region16: #{tpu_custom_call.1} parent=1 // pred_region
      %38 = dma.done [#allocation3], 32
    $region17: #{tpu_custom_call.1} parent=1 // pred_fallthru
      _
    // Predicated region
    $region18: #{tpu_custom_call.1} parent=1 // pred_check
      _
    $region19: #{tpu_custom_call.1} parent=1 // pred_check_branch
      %40 = sbr.rel (0) target = $region21
    $region20: #{tpu_custom_call.1} parent=1 // pred_region
      %42 = dma.done [#allocation6], 16
    $region21: #{tpu_custom_call.1} parent=1 // pred_fallthru
      _
    %v43 = vld [vmem:[#allocation2] sm:$0x3]
    %v44 = vld [vmem:[#allocation5] sm:$0x1]
    %v46 = vperm.slane %v44, 0
    %v48 = vsub.f32 %v43, %v46
    %v49 = vld [vmem:[%s2] sm:$0x1]
    %v51 = vperm.slane %v49, 0
    %v53 = vmul.f32 %v48, %v51
    %54 = vst [vmem:[#allocation7] sm:$0x3] %v53
    // Predicated region
    $region22: #{tpu_custom_call.1} parent=1 // pred_check
      _
    $region23: #{tpu_custom_call.1} parent=1 // pred_check_branch
      %56 = sbr.rel (0) target = $region25
    $region24: #{tpu_custom_call.1} parent=1 // pred_region
      %58 = vsyncadd [#allocation4], 0
      %s60 = sshll.u32 [#allocation7], 4
      %s61 = int_to_ptr.vmem [resolvable:$true] %s60
      %s62 = sshll.u32 %s3, 4
      %s63 = int_to_ptr.hbm [resolvable:$true] %s62
      %65 = dma.vmem_to_hbm [thread:$0]  %s61, 32, %s63, [#allocation4]
    $region25: #{tpu_custom_call.1} parent=1 // pred_fallthru
      _
    // Predicated region
    $region26: #{tpu_custom_call.1} parent=1 // pred_check
      _
    $region27: #{tpu_custom_call.1} parent=1 // pred_check_branch
      %67 = sbr.rel (0) target = $region29
    $region28: #{tpu_custom_call.1} parent=1 // pred_region
      %69 = dma.done [#allocation4], 32
    $region29: #{tpu_custom_call.1} parent=1 // pred_fallthru
      _
    %70 = vsyncpa [#allocation3], 1
    %71 = vsyncpa [#allocation6], 1
    %72 = vsyncpa [#allocation4], 1

</llo_original>
